<compile_context>
chip_gen: v7x
topology: tpu7x:2x2x1
jax: 0.10.0
libtpu: 0.0.40
codegen_flags: <defaults>
</compile_context>

<pallas_src>
import functools

import jax
import jax.numpy as jnp
from jax import lax
from jax.experimental import pallas as pl
from jax.experimental.pallas import tpu as pltpu


def _round_up(n: int, m: int) -> int:
    return ((n + m - 1) // m) * m


def _linear_kernel(x_ref, w_ref, b_ref, o_ref, acc_ref):
    # Grid = (num_b_tiles, num_n_tiles, num_k_tiles); k (hidden) is last.
    k = pl.program_id(2)

    @pl.when(k == 0)
    def _():
        # Fold the bias into the accumulator init — epilogue is then cast-only.
        acc_ref[...] = jnp.broadcast_to(
            b_ref[...].astype(jnp.float32), acc_ref.shape
        )

    # x: [TB, TK], w: [TN, TK]  ->  [TB, TN]
    # Contract last dim of x with last dim of w: consumes the [C, H]-layout
    # weight directly (no transpose materialized anywhere).
    acc_ref[...] += lax.dot_general(
        x_ref[...],
        w_ref[...],
        dimension_numbers=(((1,), (1,)), ((), ())),
        preferred_element_type=jnp.float32,
    )

    @pl.when(k == pl.num_programs(2) - 1)
    def _():
        o_ref[...] = acc_ref[...].astype(o_ref.dtype)


@functools.partial(jax.jit, static_argnames=("tb", "tn", "tk"))
def top_no_softmax(x, weight, bias, *, tb: int = 256, tn: int = 1024,
                   tk: int = 512):
    """Apply the final classifier head (nn.Linear) as a Pallas TPU kernel.

    x:      [B, H]  float32
    weight: [C, H]  float32  (PyTorch nn.Linear layout)
    bias:   [C]     float32
    returns [B, C]  float32
    """
    B, H = x.shape
    C, H2 = weight.shape
    assert H == H2, f"hidden mismatch: {H} vs {H2}"
    assert bias.shape == (C,)

    # Hardware-friendly padded shapes (only pad when actually needed).
    sub = max(8, 32 // jnp.dtype(x.dtype).itemsize)  # sublane multiple
    TB = min(tb, _round_up(B, sub))                  # batch tile
    TK = min(tk, _round_up(H, 128))                  # lane-aligned K tile
    TN = min(tn, _round_up(C, 128))                  # lane-aligned N tile
    Bp = _round_up(B, TB)
    Hp = _round_up(H, TK)
    Cp = _round_up(C, TN)

    xp = x if (Bp, Hp) == (B, H) else jnp.pad(x, ((0, Bp - B), (0, Hp - H)))
    wp = (weight if (Cp, Hp) == (C, H)
          else jnp.pad(weight, ((0, Cp - C), (0, Hp - H))))
    bp = bias.reshape(1, C)
    if Cp != C:
        bp = jnp.pad(bp, ((0, 0), (0, Cp - C)))

    grid = (Bp // TB, Cp // TN, Hp // TK)

    cost = pl.CostEstimate(
        flops=2 * B * H * C,
        transcendentals=0,
        bytes_accessed=4 * (B * H + C * H + B * C + C),
    )

    out_p = pl.pallas_call(
        _linear_kernel,
        out_shape=jax.ShapeDtypeStruct((Bp, Cp), x.dtype),
        grid_spec=pltpu.PrefetchScalarGridSpec(
            num_scalar_prefetch=0,
            grid=grid,
            in_specs=[
                pl.BlockSpec((TB, TK), lambda i, j, k: (i, k)),  # activations
                pl.BlockSpec((TN, TK), lambda i, j, k: (j, k)),  # weight stream
                pl.BlockSpec((1, TN), lambda i, j, k: (0, j)),   # bias row
            ],
            out_specs=pl.BlockSpec((TB, TN), lambda i, j, k: (i, j)),
            scratch_shapes=[pltpu.VMEM((TB, TN), jnp.float32)],
        ),
        compiler_params=pltpu.CompilerParams(
            dimension_semantics=("parallel", "parallel", "arbitrary"),
        ),
        cost_estimate=cost,
    )(xp, wp, bp)

    return out_p[:B, :C]


if __name__ == "__main__":
    # Small, deterministic synthetic shapes: batch=2, hidden=32, classes=16.
    key = jax.random.PRNGKey(0)
    kx, kw, kb = jax.random.split(key, 3)

    B, H, C = 2, 32, 16
    x = jax.random.normal(kx, (B, H), dtype=jnp.float32)
    weight = jax.random.normal(kw, (C, H), dtype=jnp.float32) * 0.05
    bias = jax.random.normal(kb, (C,), dtype=jnp.float32) * 0.05

    out = top_no_softmax(x, weight, bias)
    out = jax.block_until_ready(out)

    # Pure-JAX reference (no softmax, matching TopNoSoftmax semantics).
    ref = x @ weight.T + bias
    assert out.shape == (B, C)
    assert jnp.allclose(out, ref, atol=1e-5, rtol=1e-5), (
        f"max err {jnp.max(jnp.abs(out - ref))}"
    )

    print("KERNEL_OK")
</pallas_src>

<mosaic_0001>
module attributes {stable_mosaic.version = 11 : i64} {
  func.func @_linear_kernel(%arg0: i32, %arg1: i32, %arg2: i32, %arg3: memref<8x128xf32, #tpu.memory_space<vmem>>, %arg4: memref<128x128xf32, #tpu.memory_space<vmem>>, %arg5: memref<1x128xf32, #tpu.memory_space<vmem>>, %arg6: memref<8x128xf32, #tpu.memory_space<vmem>>, %arg7: memref<8x128xf32, #tpu.memory_space<vmem>>) attributes {dimension_semantics = [#tpu.dimension_semantics<parallel>, #tpu.dimension_semantics<parallel>, #tpu.dimension_semantics<arbitrary>], iteration_bounds = array<i64: 1, 1, 1>, scalar_prefetch = 0 : i64, scratch_operands = 1 : i64, tpu.core_type = #tpu.core_type<tc>, window_params = [{transform_indices = @transform_0, window_bounds = array<i64: 8, 128>}, {transform_indices = @transform_1, window_bounds = array<i64: 128, 128>}, {transform_indices = @transform_2, window_bounds = array<i64: 1, 128>}, {transform_indices = @transform_3, window_bounds = array<i64: 8, 128>}]} {
    %c0_i32 = arith.constant 0 : i32
    %0 = arith.cmpi eq, %arg2, %c0_i32 : i32
    %1 = arith.extui %0 : i1 to i32
    %c0_i32_0 = arith.constant 0 : i32
    %2 = arith.cmpi ne, %1, %c0_i32_0 : i32
    scf.if %2 {
      %c0_10 = arith.constant 0 : index
      %c0_11 = arith.constant 0 : index
      %12 = vector.load %arg5[%c0_10, %c0_11] : memref<1x128xf32, #tpu.memory_space<vmem>>, vector<1x128xf32>
      %13 = vector.shape_cast %12 : vector<1x128xf32> to vector<1x128xf32>
      %14 = vector.broadcast %13 : vector<1x128xf32> to vector<8x128xf32>
      %c0_12 = arith.constant 0 : index
      %c0_13 = arith.constant 0 : index
      %15 = vector.load %arg7[%c0_12, %c0_13] : memref<8x128xf32, #tpu.memory_space<vmem>>, vector<8x128xf32>
      tpu.vector_store %arg7[%c0_12, %c0_13], %14 {strides = array<i32>} : memref<8x128xf32, #tpu.memory_space<vmem>>, vector<8x128xf32>,
    } else {
    }
    %c0 = arith.constant 0 : index
    %c0_1 = arith.constant 0 : index
    %3 = vector.load %arg7[%c0, %c0_1] : memref<8x128xf32, #tpu.memory_space<vmem>>, vector<8x128xf32>
    %c0_2 = arith.constant 0 : index
    %c0_3 = arith.constant 0 : index
    %4 = vector.load %arg3[%c0_2, %c0_3] : memref<8x128xf32, #tpu.memory_space<vmem>>, vector<8x128xf32>
    %c0_4 = arith.constant 0 : index
    %c0_5 = arith.constant 0 : index
    %5 = vector.load %arg4[%c0_4, %c0_5] : memref<128x128xf32, #tpu.memory_space<vmem>>, vector<128x128xf32>
    %cst = arith.constant dense<0.000000e+00> : vector<8x128xf32>
    %6 = tpu.matmul %4, %5, %cst {dimension_numbers = #tpu.dot_dimension_numbers<[1], [1], [0], [0], [0, 0, 1, 0], [], []>} : vector<8x128xf32>, vector<128x128xf32>, vector<8x128xf32> -> vector<8x128xf32>
    %7 = arith.addf %3, %6 : vector<8x128xf32>
    %c0_6 = arith.constant 0 : index
    %c0_7 = arith.constant 0 : index
    %8 = vector.load %arg7[%c0_6, %c0_7] : memref<8x128xf32, #tpu.memory_space<vmem>>, vector<8x128xf32>
    tpu.vector_store %arg7[%c0_6, %c0_7], %7 {strides = array<i32>} : memref<8x128xf32, #tpu.memory_space<vmem>>, vector<8x128xf32>,
    %c0_i32_8 = arith.constant 0 : i32
    %9 = arith.cmpi eq, %arg2, %c0_i32_8 : i32
    %10 = arith.extui %9 : i1 to i32
    %c0_i32_9 = arith.constant 0 : i32
    %11 = arith.cmpi ne, %10, %c0_i32_9 : i32
    scf.if %11 {
      %c0_10 = arith.constant 0 : index
      %c0_11 = arith.constant 0 : index
      %12 = vector.load %arg7[%c0_10, %c0_11] : memref<8x128xf32, #tpu.memory_space<vmem>>, vector<8x128xf32>
      %c0_12 = arith.constant 0 : index
      %c0_13 = arith.constant 0 : index
      %13 = vector.load %arg6[%c0_12, %c0_13] : memref<8x128xf32, #tpu.memory_space<vmem>>, vector<8x128xf32>
      tpu.vector_store %arg6[%c0_12, %c0_13], %12 {strides = array<i32>} : memref<8x128xf32, #tpu.memory_space<vmem>>, vector<8x128xf32>,
    } else {
    }
    return
  }
  func.func @transform_0(%arg0: i32, %arg1: i32, %arg2: i32) -> (i32, i32) {
    %c0_i32 = arith.constant 0 : i32
    return %arg0, %arg2 : i32, i32
  }
  func.func @transform_1(%arg0: i32, %arg1: i32, %arg2: i32) -> (i32, i32) {
    %c0_i32 = arith.constant 0 : i32
    return %arg1, %arg2 : i32, i32
  }
  func.func @transform_2(%arg0: i32, %arg1: i32, %arg2: i32) -> (i32, i32) {
    %c0_i32 = arith.constant 0 : i32
    %c0_i32_0 = arith.constant 0 : i32
    return %c0_i32, %arg1 : i32, i32
  }
  func.func @transform_3(%arg0: i32, %arg1: i32, %arg2: i32) -> (i32, i32) {
    %c0_i32 = arith.constant 0 : i32
    return %arg0, %arg1 : i32, i32
  }
}

</mosaic_0001>

<llo_original>
// kernel: top_no_softmax.1
$region0: #{top_no_softmax.1}
  #allocation0 [shape = 'u32[]', space=smem, size = 0x4, offset = 0x4, fixed_abs, tag = 'smem constant byte address 0x4 - core index']
  #allocation1 [shape = 'u32[144,128]{1,0:T(1,128)}', space=vmem, size = 0x12000, scoped, tag = 'internal scratch']
  #allocation2 [shape = 'f32[8,128]{1,0:T(8,128)}', space=vmem, size = 0x1000, scoped, tag = 'scratch operand']
  %s0 = inlined_call_operand.vmem [shape: f32[8,128], index: 0, kind: input, shape index: {}]
  %s1 = inlined_call_operand.vmem [shape: f32[128,128], index: 1, kind: input, shape index: {}]
  %s2 = inlined_call_operand.vmem [shape: f32[1,128], index: 2, kind: input, shape index: {}]
  %s3 = inlined_call_operand.vmem [shape: f32[8,128], index: 3, kind: output, shape index: {}]
  %s4 = sld [smem:[#allocation0]]
  $region30: #{top_no_softmax.1} parent=0
    _
  %s6 = ssub.s32 1, %s4
  %s7 = scalar_select 0, %s6, %s4
  // Predicated region
  $region2: #{top_no_softmax.1} parent=0 // pred_check
    _
  $region3: #{top_no_softmax.1} parent=0 // pred_check_branch
    %9 = sbr.rel (0) target = $region5
  $region4: #{top_no_softmax.1} parent=0 // pred_region
    _
  $region5: #{top_no_softmax.1} parent=0 // pred_fallthru
    _
  // Predicated region
  $region6: #{top_no_softmax.1} parent=0 // pred_check
    _
  $region7: #{top_no_softmax.1} parent=0 // pred_check_branch
    %11 = sbr.rel (0) target = $region9
  $region8: #{top_no_softmax.1} parent=0 // pred_region
    _
  $region9: #{top_no_softmax.1} parent=0 // pred_fallthru
    _
  // Predicated region
  $region10: #{top_no_softmax.1} parent=0 // pred_check
    _
  $region11: #{top_no_softmax.1} parent=0 // pred_check_branch
    %13 = sbr.rel (0) target = $region13
  $region12: #{top_no_softmax.1} parent=0 // pred_region
    _
  $region13: #{top_no_softmax.1} parent=0 // pred_fallthru
    _
  %p14 = scmp.eq.s32.totalorder 0, 0
  // Predicated region
  $region14: #{top_no_softmax.1} parent=0 // pred_check
    %p15 = pneg %p14
  $region15: #{top_no_softmax.1} parent=0 // pred_check_branch
    %17 = sbr.rel (%p15) target = $region17
  $region16: #{top_no_softmax.1} parent=0 // pred_region
    %v18 = vld [vmem:[%s2] sm:$0x1]
    %v20 = vlaneseq
    %v21 = vshrl.u32 %v20, 7
    %v22 = vsub.s32 0, %v21
    %v23 = vrot.slane %v18, %v22
    %25 = vst [vmem:[#allocation2] sm:$0xff] %v23
  $region17: #{top_no_softmax.1} parent=0 // pred_fallthru
    _
  %v26 = vld [vmem:[#allocation2] sm:$0xff]
  %v27 = vld [vmem:[%s0] sm:$0xff]
  %v28 = vld [vmem:[%s1] sm:$0xff]
  %v29 = vld [vmem:[%s1 + $0x8] sm:$0xff]
  %v30 = vld [vmem:[%s1 + $0x10] sm:$0xff]
  %v31 = vld [vmem:[%s1 + $0x18] sm:$0xff]
  %v32 = vld [vmem:[%s1 + $0x20] sm:$0xff]
  %v33 = vld [vmem:[%s1 + $0x28] sm:$0xff]
  %v34 = vld [vmem:[%s1 + $0x30] sm:$0xff]
  %v35 = vld [vmem:[%s1 + $0x38] sm:$0xff]
  %v36 = vld [vmem:[%s1 + $0x40] sm:$0xff]
  %v37 = vld [vmem:[%s1 + $0x48] sm:$0xff]
  %v38 = vld [vmem:[%s1 + $0x50] sm:$0xff]
  %v39 = vld [vmem:[%s1 + $0x58] sm:$0xff]
  %v40 = vld [vmem:[%s1 + $0x60] sm:$0xff]
  %v41 = vld [vmem:[%s1 + $0x68] sm:$0xff]
  %v42 = vld [vmem:[%s1 + $0x70] sm:$0xff]
  %v43 = vld [vmem:[%s1 + $0x78] sm:$0xff]
  %44 = vmatprep.subr.mxu0 0.0
  %45 = vmatpush1.xpose.msra.mxu0 %v28
  %46 = vmatprep.subr.mxu0 0.0
  %47 = vmatpush1.xpose.msra.mxu0 %v29
  %48 = vmatprep.subr.mxu0 0.0
  %49 = vmatpush1.xpose.msra.mxu0 %v30
  %50 = vmatprep.subr.mxu0 0.0
  %51 = vmatpush1.xpose.msra.mxu0 %v31
  %52 = vmatprep.subr.mxu0 0.0
  %53 = vmatpush1.xpose.msra.mxu0 %v32
  %54 = vmatprep.subr.mxu0 0.0
  %55 = vmatpush1.xpose.msra.mxu0 %v33
  %56 = vmatprep.subr.mxu0 0.0
  %57 = vmatpush1.xpose.msra.mxu0 %v34
  %58 = vmatprep.subr.mxu0 0.0
  %59 = vmatpush1.xpose.msra.mxu0 %v35
  %60 = vmatprep.subr.mxu0 0.0
  %61 = vmatpush1.xpose.msra.mxu0 %v36
  %62 = vmatprep.subr.mxu0 0.0
  %63 = vmatpush1.xpose.msra.mxu0 %v37
  %64 = vmatprep.subr.mxu0 0.0
  %65 = vmatpush1.xpose.msra.mxu0 %v38
  %66 = vmatprep.subr.mxu0 0.0
  %67 = vmatpush1.xpose.msra.mxu0 %v39
  %68 = vmatprep.subr.mxu0 0.0
  %69 = vmatpush1.xpose.msra.mxu0 %v40
  %70 = vmatprep.subr.mxu0 0.0
  %71 = vmatpush1.xpose.msra.mxu0 %v41
  %72 = vmatprep.subr.mxu0 0.0
  %73 = vmatpush1.xpose.msra.mxu0 %v42
  %74 = vmatprep.subr.mxu0 0.0
  %75 = vmatpush1.xpose.msra.mxu0 %v43
  %76 = vmatprep.subr.mxu0 0.0
  %77 = vmatpush1.xpose.msra.mxu0 0.0
  %78 = vmatprep.subr.mxu0 0.0
  %79 = vmatpush1.xpose.msra.mxu0 0.0
  %80 = vmatprep.subr.mxu0 0.0
  %81 = vmatpush1.xpose.msra.mxu0 0.0
  %82 = vmatprep.subr.mxu0 0.0
  %83 = vmatpush1.xpose.msra.mxu0 0.0
  %84 = vmatprep.subr.mxu0 0.0
  %85 = vmatpush1.xpose.msra.mxu0 0.0
  %86 = vmatprep.subr.mxu0 0.0
  %87 = vmatpush1.xpose.msra.mxu0 0.0
  %88 = vmatprep.subr.mxu0 0.0
  %89 = vmatpush1.xpose.msra.mxu0 0.0
  %90 = vmatprep.subr.mxu0 0.0
  %91 = vmatpush1.xpose.msra.mxu0 0.0
  %92 = vmatprep.subr.mxu0 0.0
  %93 = vmatpush1.xpose.msra.mxu0 0.0
  %94 = vmatprep.subr.mxu0 0.0
  %95 = vmatpush1.xpose.msra.mxu0 0.0
  %96 = vmatprep.subr.mxu0 0.0
  %97 = vmatpush1.xpose.msra.mxu0 0.0
  %98 = vmatprep.subr.mxu0 0.0
  %99 = vmatpush1.xpose.msra.mxu0 0.0
  %100 = vmatprep.subr.mxu0 0.0
  %101 = vmatpush1.xpose.msra.mxu0 0.0
  %102 = vmatprep.subr.mxu0 0.0
  %103 = vmatpush1.xpose.msra.mxu0 0.0
  %104 = vmatprep.subr.mxu0 0.0
  %105 = vmatpush1.xpose.msra.mxu0 0.0
  %106 = vmatprep.subr.mxu0 0.0
  %107 = vmatpush1.xpose.msra.mxu0 0.0
  %108 = vmatprep.mubr.f32.mxu0 0.0
  %109 = vmatmul.mubr.f32.gmra.mrb[0].mxu0 %v27
  %v110 = vpop.f32.mrb[0].mxu0
  %v111 = vadd.f32 0.0, %v110
  %v112 = vpop.f32.mrb[0].mxu0
  %113 = vdwg.mxu0
  %v114 = vadd.f32 %v26, %v111
  %115 = vst [vmem:[#allocation2] sm:$0xff] %v114
  // Predicated region
  $region18: #{top_no_softmax.1} parent=0 // pred_check
    %p116 = pneg %p14
  $region19: #{top_no_softmax.1} parent=0 // pred_check_branch
    %118 = sbr.rel (%p116) target = $region21
  $region20: #{top_no_softmax.1} parent=0 // pred_region
    %v119 = vld [vmem:[#allocation2] sm:$0xff]
    %120 = vst [vmem:[%s3] sm:$0xff] %v119
  $region21: #{top_no_softmax.1} parent=0 // pred_fallthru
    _
  // Predicated region
  $region22: #{top_no_softmax.1} parent=0 // pred_check
    _
  $region23: #{top_no_softmax.1} parent=0 // pred_check_branch
    %122 = sbr.rel (0) target = $region25
  $region24: #{top_no_softmax.1} parent=0 // pred_region
    _
  $region25: #{top_no_softmax.1} parent=0 // pred_fallthru
    _
  // Predicated region
  $region26: #{top_no_softmax.1} parent=0 // pred_check
    _
  $region27: #{top_no_softmax.1} parent=0 // pred_check_branch
    %124 = sbr.rel (0) target = $region29
  $region28: #{top_no_softmax.1} parent=0 // pred_region
    _
  $region29: #{top_no_softmax.1} parent=0 // pred_fallthru
    _

</llo_original>
